<compile_context>
chip_gen: v5e
topology: v5e:2x2
jax: 0.10.0
libtpu: 0.0.40
codegen_flags: <defaults>
</compile_context>

<pallas_src>
import jax
import jax.numpy as jnp
from jax import lax
from jax.experimental import pallas as pl
from jax.experimental.pallas import tpu as pltpu


LN_EPS = 1e-5   # PyTorch nn.LayerNorm default eps
PACK = 8        # tokens packed per kernel row (8 * K = 256 lanes for K=32)


# --------------------------------------------------------------------------- #
# Kernel
# --------------------------------------------------------------------------- #
def _patch_embed_kernel(xp_ref, w_ref, s_ref, sm_ref, sb_ref, o_ref):
    """Fused projection + per-token LayerNorm on PACK-token packed rows.

    xp_ref: (T, PACK*K)          packed flattened patches (compute dtype)
    w_ref:  (PACK*K, PACK*E+PACK) block-diag conv weight + per-token mean cols
    s_ref:  (3, PACK*E+PACK) f32 [bias_rep|bias_mean ; gamma_rep|0 ; beta_rep|0]
    sm_ref: (PACK*E, PACK)       per-token-segment averaging matrix (1/E blocks)
    sb_ref: (PACK, PACK*E)       per-token-segment broadcast matrix (1 blocks)
    o_ref:  (T, PACK*E)          output (compute dtype)

    All math is strictly row-local, so partially-valid boundary blocks of the
    cdiv grid (and zero-padded tail tokens) never leak into valid rows; Pallas
    drops the out-of-range output rows on writeback.
    """
    e8 = o_ref.shape[1]

    # Main MXU matmul, f32 accumulation.  The last PACK columns of w_ref are
    # the per-token-segment row-mean columns, so the LN mean is free here.
    z = jnp.dot(xp_ref[...], w_ref[...], preferred_element_type=jnp.float32)
    z = z + s_ref[0:1, :]                 # conv bias (+ mean(bias) in tail cols)

    y = z[:, :e8]                         # (T, PACK*E) conv outputs, f32
    mean = z[:, e8:]                      # (T, PACK)   per-token mean, f32

    # Per-token E[y^2] via a small MXU dot instead of an XLU lane reduction.
    aux = sm_ref.dtype                    # bf16 path -> bf16 aux matmuls
    meansq = jnp.dot((y * y).astype(aux), sm_ref[...],
                     preferred_element_type=jnp.float32)       # (T, PACK)
    var = jnp.maximum(meansq - mean * mean, 0.0)
    rstd = lax.rsqrt(var + LN_EPS)                             # (T, PACK), EUP

    # Broadcast per-token scalars back over their 48-lane segments via MXU.
    mean_b = jnp.dot(mean.astype(aux), sb_ref[...],
                     preferred_element_type=jnp.float32)       # (T, PACK*E)
    rstd_b = jnp.dot(rstd.astype(aux), sb_ref[...],
                     preferred_element_type=jnp.float32)       # (T, PACK*E)

    out = (y - mean_b) * rstd_b * s_ref[1:2, :e8] + s_ref[2:3, :e8]
    o_ref[...] = out.astype(o_ref.dtype)


# --------------------------------------------------------------------------- #
# Tiling / pallas_call wrapper
# --------------------------------------------------------------------------- #
def _choose_tile_rows(n_rows, itemsize, k8, e8, nw):
    """Largest packed-row tile that fits a conservative VMEM budget.

    Budget counts double-buffered input+output tiles (compute dtype) plus ~6
    full-width f32 in-kernel temporaries, so the kernel stays well inside the
    32 MiB scoped-VMEM limit on every generation (v7x included).  Single-TC
    chips (v5e/v6e) get the largest tile that fits; we only shrink to keep the
    grid >= 2 so both v7x TensorCores receive work.
    """
    per_row = 2 * (k8 + e8) * itemsize + 6 * nw * 4
    budget = 20 * 1024 * 1024
    tile = int(budget // per_row)
    tile = min(tile, 2048, n_rows)
    if tile >= 8:
        tile -= tile % 8                  # sublane multiple
    while tile >= 16 and pl.cdiv(n_rows, tile) < 2:
        tile //= 2
        tile -= tile % 8
    return max(tile, 1)


def _fused_proj_norm(xp, w_aug, scales, s_mean, s_bcast, *, out_dtype):
    """xp: (N/PACK, PACK*K) -> (N/PACK, PACK*E) via the fused kernel."""
    n_rows, k8 = xp.shape
    nw = w_aug.shape[1]
    e8 = s_bcast.shape[1]
    tile = _choose_tile_rows(n_rows, jnp.dtype(xp.dtype).itemsize, k8, e8, nw)
    grid = (pl.cdiv(n_rows, tile),)

    return pl.pallas_call(
        _patch_embed_kernel,
        out_shape=jax.ShapeDtypeStruct((n_rows, e8), out_dtype),
        grid_spec=pltpu.PrefetchScalarGridSpec(
            num_scalar_prefetch=0,
            grid=grid,
            in_specs=[
                pl.BlockSpec((tile, k8), lambda i: (i, 0)),
                # Constant-index blocks: fetched once, stay VMEM-resident
                # across grid steps (block index never changes).
                pl.BlockSpec((w_aug.shape[0], nw), lambda i: (0, 0)),
                pl.BlockSpec((3, nw), lambda i: (0, 0)),
                pl.BlockSpec((e8, s_mean.shape[1]), lambda i: (0, 0)),
                pl.BlockSpec((s_bcast.shape[0], e8), lambda i: (0, 0)),
            ],
            out_specs=pl.BlockSpec((tile, e8), lambda i: (i, 0)),
        ),
        compiler_params=pltpu.CompilerParams(
            dimension_semantics=("parallel",),
            vmem_limit_bytes=32 * 1024 * 1024,
        ),
    )(xp, w_aug, scales, s_mean, s_bcast)


# --------------------------------------------------------------------------- #
# Parameter / operand preparation (tiny, done once per call in glue)
# --------------------------------------------------------------------------- #
def _prepare_operands(conv_w, conv_b, ln_w, ln_b, K, E, compute_dtype):
    f32 = jnp.float32
    w = conv_w.reshape(E, K).T.astype(f32)                      # (K, E)
    eye = jnp.eye(PACK, dtype=f32)

    # Block-diagonal packed weight + PACK per-token-segment row-mean columns.
    w_bd = jnp.kron(eye, w)                                     # (PACK*K, PACK*E)
    w_mean = w_bd.reshape(PACK * K, PACK, E).mean(axis=-1)      # (PACK*K, PACK)
    w_aug = jnp.concatenate([w_bd, w_mean], axis=1).astype(compute_dtype)

    b = conv_b.astype(f32)
    g = ln_w.astype(f32)
    bt = ln_b.astype(f32)
    zeros = jnp.zeros((PACK,), f32)
    scales = jnp.stack([
        jnp.concatenate([jnp.tile(b, PACK), jnp.full((PACK,), jnp.mean(b))]),
        jnp.concatenate([jnp.tile(g, PACK), zeros]),
        jnp.concatenate([jnp.tile(bt, PACK), zeros]),
    ])                                                          # (3, PACK*E+PACK) f32

    seg = jnp.kron(eye, jnp.ones((E, 1), f32))                  # (PACK*E, PACK)
    s_mean = (seg / E).astype(compute_dtype)                    # per-segment average
    s_bcast = seg.T.astype(compute_dtype)                       # per-segment broadcast
    return w_aug, scales, s_mean, s_bcast


def _pad_to_patch(x, patch_size):
    """Right-pad spatial dims so they divide the patch size (matches F.pad)."""
    pd, ph, pw = patch_size
    _, _, D, H, W = x.shape
    pads = ((0, 0), (0, 0), (0, (-D) % pd), (0, (-H) % ph), (0, (-W) % pw))
    if any(p[1] for p in pads):
        x = jnp.pad(x, pads)
    return x


# --------------------------------------------------------------------------- #
# Forward
# --------------------------------------------------------------------------- #
def patch_embed_forward(x, params, patch_size):
    """JAX/Pallas equivalent of PatchEmbed.forward.

    x: (B, C, D, H, W) float array (NCDHW, same as PyTorch).  Compute/I/O dtype
    follows x.dtype (feed bf16 on bandwidth-starved chips such as v5e).
    params: dict with conv_w (E, C, pd, ph, pw), conv_b (E,), ln_w (E,), ln_b (E,)
    Returns: (B, D', H', W', E) in x.dtype
    """
    pd, ph, pw = patch_size
    x = _pad_to_patch(x, patch_size)
    B, C, D, H, W = x.shape
    Dp, Hp, Wp = D // pd, H // ph, W // pw

    conv_w = params["conv_w"]
    E = conv_w.shape[0]
    K = C * pd * ph * pw
    compute_dtype = x.dtype

    # Patch extraction: inner flatten order (C, pd, ph, pw) matches the Conv3d
    # weight layout (E, C, pd, ph, pw).
    # TODO(synk): this transpose is one extra XLA HBM pass over x; in-kernel
    # fusion needs a lane-deinterleaving DMA Mosaic does not lower robustly.
    xr = x.reshape(B, C, Dp, pd, Hp, ph, Wp, pw)
    xr = xr.transpose(0, 2, 4, 6, 1, 3, 5, 7)        # (B, Dp, Hp, Wp, C, pd, ph, pw)
    x_tokens = xr.reshape(B * Dp * Hp * Wp, K)       # (N, K)
    N = x_tokens.shape[0]

    # Pack PACK tokens per kernel row (free row-major view; <= PACK-1 zero rows
    # of padding for ragged N, fused by XLA with the transpose copy above).
    n_pad = (-N) % PACK
    if n_pad:
        x_tokens = jnp.pad(x_tokens, ((0, n_pad), (0, 0)))
    xp = x_tokens.reshape((N + n_pad) // PACK, PACK * K)

    w_aug, scales, s_mean, s_bcast = _prepare_operands(
        conv_w, params["conv_b"], params["ln_w"], params["ln_b"],
        K, E, compute_dtype)

    yp = _fused_proj_norm(xp, w_aug, scales, s_mean, s_bcast,
                          out_dtype=compute_dtype)    # (N_pack, PACK*E)

    y = yp.reshape(-1, E)                             # free row-major view
    if n_pad:
        y = y[:N]

    # pos_drop with drop_rate=0.0 (and eval mode) is identity.
    # TODO(synk): dropout with drop_rate > 0 in training mode not implemented.
    return y.reshape(B, Dp, Hp, Wp, E)


# --------------------------------------------------------------------------- #
# Init + pure-JAX reference for the sanity check
# --------------------------------------------------------------------------- #
def init_params(key, in_channels, embed_dim, patch_size):
    pd, ph, pw = patch_size
    k_w, k_b = jax.random.split(key)
    fan_in = in_channels * pd * ph * pw
    bound = 1.0 / (fan_in ** 0.5)
    conv_w = jax.random.uniform(
        k_w, (embed_dim, in_channels, pd, ph, pw),
        minval=-bound, maxval=bound, dtype=jnp.float32)
    conv_b = jax.random.uniform(
        k_b, (embed_dim,), minval=-bound, maxval=bound, dtype=jnp.float32)
    ln_w = jnp.ones((embed_dim,), jnp.float32)
    ln_b = jnp.zeros((embed_dim,), jnp.float32)
    return {"conv_w": conv_w, "conv_b": conv_b, "ln_w": ln_w, "ln_b": ln_b}


def _reference_forward(x, params, patch_size):
    """Pure-JAX reference (lax.conv + layernorm)."""
    pd, ph, pw = patch_size
    x = _pad_to_patch(x, patch_size)
    y = lax.conv_general_dilated(
        x, params["conv_w"], window_strides=(pd, ph, pw), padding="VALID",
        dimension_numbers=("NCDHW", "OIDHW", "NCDHW"),
        precision=lax.Precision.HIGHEST)
    y = y + params["conv_b"][None, :, None, None, None]
    B, E, Dp, Hp, Wp = y.shape
    y = y.reshape(B, E, Dp * Hp * Wp).transpose(0, 2, 1)      # (B, N, E)
    mean = jnp.mean(y, axis=-1, keepdims=True)
    var = jnp.mean((y - mean) ** 2, axis=-1, keepdims=True)
    y = (y - mean) / jnp.sqrt(var + LN_EPS)
    y = y * params["ln_w"] + params["ln_b"]
    return y.reshape(B, Dp, Hp, Wp, E)


if __name__ == "__main__":
    key = jax.random.PRNGKey(0)
    k_x, k_p, k_x2 = jax.random.split(key, 3)

    in_channels = 4
    embed_dim = 48
    patch_size = (2, 2, 2)

    params = init_params(k_p, in_channels, embed_dim, patch_size)

    # Case 1: divisible spatial dims, f32 I/O.
    B, D, H, W = 2, 8, 16, 16
    x = jax.random.normal(k_x, (B, in_channels, D, H, W), dtype=jnp.float32)
    out = jax.block_until_ready(patch_embed_forward(x, params, patch_size))
    ref = _reference_forward(x, params, patch_size)
    assert out.shape == (B, D // 2, H // 2, W // 2, embed_dim), out.shape
    assert jnp.allclose(out, ref, atol=2e-4, rtol=2e-4), \
        float(jnp.max(jnp.abs(out - ref)))

    # Case 2: non-divisible spatial dims (F.pad path, ragged token count padded
    # to a multiple of PACK, partially-valid boundary grid block), f32 I/O.
    x2 = jax.random.normal(k_x2, (1, in_channels, 5, 9, 13), dtype=jnp.float32)
    out2 = jax.block_until_ready(patch_embed_forward(x2, params, patch_size))
    ref2 = _reference_forward(x2, params, patch_size)
    assert out2.shape == (1, 3, 5, 7, embed_dim), out2.shape
    assert jnp.allclose(out2, ref2, atol=2e-4, rtol=2e-4), \
        float(jnp.max(jnp.abs(out2 - ref2)))

    # Case 3: bf16 I/O path (native bf16 MXU matmul with bf16 packed weight;
    # accumulation and LayerNorm math stay in f32).
    xb = x.astype(jnp.bfloat16)
    outb = jax.block_until_ready(patch_embed_forward(xb, params, patch_size))
    refb = _reference_forward(xb.astype(jnp.float32), params, patch_size)
    assert outb.dtype == jnp.bfloat16, outb.dtype
    assert jnp.allclose(outb.astype(jnp.float32), refb, atol=0.2, rtol=0.05), \
        float(jnp.max(jnp.abs(outb.astype(jnp.float32) - refb)))

    print("KERNEL_OK")
</pallas_src>

<mosaic_0001>
module attributes {stable_mosaic.version = 11 : i64} {
  func.func @_patch_embed_kernel(%arg0: i32, %arg1: memref<32x256xf32, #tpu.memory_space<vmem>>, %arg2: memref<256x392xf32, #tpu.memory_space<vmem>>, %arg3: memref<3x392xf32, #tpu.memory_space<vmem>>, %arg4: memref<384x8xf32, #tpu.memory_space<vmem>>, %arg5: memref<8x384xf32, #tpu.memory_space<vmem>>, %arg6: memref<32x384xf32, #tpu.memory_space<vmem>>) attributes {dimension_semantics = [#tpu.dimension_semantics<parallel>], iteration_bounds = array<i64: 2>, scalar_prefetch = 0 : i64, scratch_operands = 0 : i64, tpu.core_type = #tpu.core_type<tc>, window_params = [{transform_indices = @transform_0, window_bounds = array<i64: 32, 256>}, {pipeline_mode = #tpu.pipeline_mode<synchronous>, transform_indices = @transform_1, window_bounds = array<i64: 256, 392>}, {pipeline_mode = #tpu.pipeline_mode<synchronous>, transform_indices = @transform_2, window_bounds = array<i64: 3, 392>}, {pipeline_mode = #tpu.pipeline_mode<synchronous>, transform_indices = @transform_3, window_bounds = array<i64: 384, 8>}, {pipeline_mode = #tpu.pipeline_mode<synchronous>, transform_indices = @transform_4, window_bounds = array<i64: 8, 384>}, {transform_indices = @transform_5, window_bounds = array<i64: 32, 384>}]} {
    %c0 = arith.constant 0 : index
    %c0_0 = arith.constant 0 : index
    %0 = vector.load %arg1[%c0, %c0_0] : memref<32x256xf32, #tpu.memory_space<vmem>>, vector<32x256xf32>
    %c0_1 = arith.constant 0 : index
    %c0_2 = arith.constant 0 : index
    %1 = vector.load %arg2[%c0_1, %c0_2] : memref<256x392xf32, #tpu.memory_space<vmem>>, vector<256x392xf32>
    %cst = arith.constant dense<0.000000e+00> : vector<32x392xf32>
    %2 = tpu.matmul %0, %1, %cst {dimension_numbers = #tpu.dot_dimension_numbers<[1], [0], [0], [1], [0, 0, 1, 1], [], []>} : vector<32x256xf32>, vector<256x392xf32>, vector<32x392xf32> -> vector<32x392xf32>
    %c0_3 = arith.constant 0 : index
    %c0_4 = arith.constant 0 : index
    %3 = vector.load %arg3[%c0_3, %c0_4] : memref<3x392xf32, #tpu.memory_space<vmem>>, vector<1x392xf32>
    %4 = vector.broadcast %3 : vector<1x392xf32> to vector<32x392xf32>
    %5 = arith.addf %2, %4 : vector<32x392xf32>
    %6 = vector.extract_strided_slice %5 {offsets = [0, 0], sizes = [32, 384], strides = [1, 1]} : vector<32x392xf32> to vector<32x384xf32>
    %7 = vector.extract_strided_slice %5 {offsets = [0, 384], sizes = [32, 8], strides = [1, 1]} : vector<32x392xf32> to vector<32x8xf32>
    %8 = arith.mulf %6, %6 : vector<32x384xf32>
    %c0_5 = arith.constant 0 : index
    %c0_6 = arith.constant 0 : index
    %9 = vector.load %arg4[%c0_5, %c0_6] : memref<384x8xf32, #tpu.memory_space<vmem>>, vector<384x8xf32>
    %cst_7 = arith.constant dense<0.000000e+00> : vector<32x8xf32>
    %10 = tpu.matmul %8, %9, %cst_7 {dimension_numbers = #tpu.dot_dimension_numbers<[1], [0], [0], [1], [0, 0, 1, 1], [], []>} : vector<32x384xf32>, vector<384x8xf32>, vector<32x8xf32> -> vector<32x8xf32>
    %11 = arith.mulf %7, %7 : vector<32x8xf32>
    %12 = arith.subf %10, %11 : vector<32x8xf32>
    %cst_8 = arith.constant 0.000000e+00 : f32
    %13 = vector.broadcast %cst_8 : f32 to vector<32x8xf32>
    %14 = arith.maximumf %12, %13 : vector<32x8xf32>
    %cst_9 = arith.constant 9.99999974E-6 : f32
    %15 = vector.broadcast %cst_9 : f32 to vector<32x8xf32>
    %16 = arith.addf %14, %15 : vector<32x8xf32>
    %17 = math.rsqrt %16 : vector<32x8xf32>
    %c0_10 = arith.constant 0 : index
    %c0_11 = arith.constant 0 : index
    %18 = vector.load %arg5[%c0_10, %c0_11] : memref<8x384xf32, #tpu.memory_space<vmem>>, vector<8x384xf32>
    %cst_12 = arith.constant dense<0.000000e+00> : vector<32x384xf32>
    %19 = tpu.matmul %7, %18, %cst_12 {dimension_numbers = #tpu.dot_dimension_numbers<[1], [0], [0], [1], [0, 0, 1, 1], [], []>} : vector<32x8xf32>, vector<8x384xf32>, vector<32x384xf32> -> vector<32x384xf32>
    %c0_13 = arith.constant 0 : index
    %c0_14 = arith.constant 0 : index
    %20 = vector.load %arg5[%c0_13, %c0_14] : memref<8x384xf32, #tpu.memory_space<vmem>>, vector<8x384xf32>
    %cst_15 = arith.constant dense<0.000000e+00> : vector<32x384xf32>
    %21 = tpu.matmul %17, %20, %cst_15 {dimension_numbers = #tpu.dot_dimension_numbers<[1], [0], [0], [1], [0, 0, 1, 1], [], []>} : vector<32x8xf32>, vector<8x384xf32>, vector<32x384xf32> -> vector<32x384xf32>
    %22 = arith.subf %6, %19 : vector<32x384xf32>
    %23 = arith.mulf %22, %21 : vector<32x384xf32>
    %c1 = arith.constant 1 : index
    %c0_16 = arith.constant 0 : index
    %24 = vector.load %arg3[%c1, %c0_16] : memref<3x392xf32, #tpu.memory_space<vmem>>, vector<1x384xf32>
    %25 = vector.broadcast %24 : vector<1x384xf32> to vector<32x384xf32>
    %26 = arith.mulf %23, %25 : vector<32x384xf32>
    %c2 = arith.constant 2 : index
    %c0_17 = arith.constant 0 : index
    %27 = vector.load %arg3[%c2, %c0_17] : memref<3x392xf32, #tpu.memory_space<vmem>>, vector<1x384xf32>
    %28 = vector.broadcast %27 : vector<1x384xf32> to vector<32x384xf32>
    %29 = arith.addf %26, %28 : vector<32x384xf32>
    %c0_18 = arith.constant 0 : index
    %c0_19 = arith.constant 0 : index
    %30 = vector.load %arg6[%c0_18, %c0_19] : memref<32x384xf32, #tpu.memory_space<vmem>>, vector<32x384xf32>
    tpu.vector_store %arg6[%c0_18, %c0_19], %29 {strides = array<i32>} : memref<32x384xf32, #tpu.memory_space<vmem>>, vector<32x384xf32>,
    return
  }
  func.func @transform_0(%arg0: i32) -> (i32, i32) {
    %c0_i32 = arith.constant 0 : i32
    %c0_i32_0 = arith.constant 0 : i32
    return %arg0, %c0_i32 : i32, i32
  }
  func.func @transform_1(%arg0: i32) -> (i32, i32) {
    %c0_i32 = arith.constant 0 : i32
    %c0_i32_0 = arith.constant 0 : i32
    %c0_i32_1 = arith.constant 0 : i32
    return %c0_i32, %c0_i32_0 : i32, i32
  }
  func.func @transform_2(%arg0: i32) -> (i32, i32) {
    %c0_i32 = arith.constant 0 : i32
    %c0_i32_0 = arith.constant 0 : i32
    %c0_i32_1 = arith.constant 0 : i32
    return %c0_i32, %c0_i32_0 : i32, i32
  }
  func.func @transform_3(%arg0: i32) -> (i32, i32) {
    %c0_i32 = arith.constant 0 : i32
    %c0_i32_0 = arith.constant 0 : i32
    %c0_i32_1 = arith.constant 0 : i32
    return %c0_i32, %c0_i32_0 : i32, i32
  }
  func.func @transform_4(%arg0: i32) -> (i32, i32) {
    %c0_i32 = arith.constant 0 : i32
    %c0_i32_0 = arith.constant 0 : i32
    %c0_i32_1 = arith.constant 0 : i32
    return %c0_i32, %c0_i32_0 : i32, i32
  }
  func.func @transform_5(%arg0: i32) -> (i32, i32) {
    %c0_i32 = arith.constant 0 : i32
    %c0_i32_0 = arith.constant 0 : i32
    return %arg0, %c0_i32 : i32, i32
  }
}

</mosaic_0001>

<llo_original>
// kernel: tpu_custom_call.1
$region0: #{tpu_custom_call.1}
  #allocation0 [shape = 'u32[]', space=smem, size = 0x4, offset = 0x4, fixed_abs, tag = 'smem constant byte address 0x4 - core index']
  #allocation1 [shape = 'u32[72,128]{1,0:T(1,128)}', space=vmem, size = 0x9000, scoped, tag = 'internal scratch']
  %s0 = inlined_call_operand.vmem [shape: f32[64,256], index: 0, kind: input, shape index: {}]
  %s1 = inlined_call_operand.vmem [shape: f32[256,392], index: 1, kind: input, shape index: {}]
  %s2 = inlined_call_operand.vmem [shape: f32[3,392], index: 2, kind: input, shape index: {}]
  %s3 = inlined_call_operand.vmem [shape: f32[384,8], index: 3, kind: input, shape index: {}]
  %s4 = inlined_call_operand.vmem [shape: f32[8,384], index: 4, kind: input, shape index: {}]
  %s5 = inlined_call_operand.hbm [shape: f32[64,384], index: 5, kind: output, shape index: {}]
  %s6 = sld [smem:[#allocation0]]
  $region53: #{tpu_custom_call.1} parent=0
    _
  %s8 = ssub.s32 1, %s6
  %s9 = scalar_select 0, %s8, %s6
  $region1: #{tpu_custom_call.1} parent=0
    #allocation2 [shape = 'u8[98304]{0}', space=vmem, size = 0x18000, scoped, tag = 'output window, operand 0']
    #allocation3 [shape = 's32[2]{0}', space=sflag, size = 0x8, scoped, tag = 'scoped memory for tpu_custom_call.1']
    %10 = vsyncpa [#allocation3], 0
    %s11 = scalar_lea.sflag [#allocation3], 1
    %12 = vsyncpa %s11, 0
    loop: start=0, step=1, limit=4
    $region2: #{tpu_custom_call.1} parent=1 // loop_pre_header
      _
    $region3: #{tpu_custom_call.1} parent=1 // loop_header
      %s14 = sphi 0, %s18
      %p15 = scmp.ge.s32.totalorder %s14, 4
      %s24 = sphi 0, %s26
      %s27 = sphi 0, %s24
      %s28 = sphi 0, %s27
      %s44 = sphi 0, %s28
      %s48 = sphi 0, %s48
      %s50 = sphi 0, %s48
      %s51 = sphi 0, %s50
      %s65 = sphi 0, %s51
      %s69 = sphi 0, %s69
      %s71 = sphi 0, %s69
      %s72 = sphi 0, %s71
      %s86 = sphi 0, %s72
      %s90 = sphi 0, %s90
      %s92 = sphi 0, %s90
      %s93 = sphi 0, %s92
      %s107 = sphi 0, %s93
      %s111 = sphi 0, %s111
      %s113 = sphi 0, %s111
      %s114 = sphi 0, %s113
      %s128 = sphi 0, %s114
      %s134 = sphi 0, %s136
      %s137 = sphi 0, %s134
      %s138 = sphi 0, %s137
      %s154 = sphi 0, %s138
    $region4: #{tpu_custom_call.1} parent=1 // loop_header_branch
      %17 = sbr.rel (%p15) target = $region8
    $region5: #{tpu_custom_call.1} parent=1 // loop_body
      %s19 = ssub.s32 %s14, 1
      %s20 = ssub.s32 %s14, 2
      %s21 = sadd.s32 %s14, 1
      %s22 = ssub.s32 %s14, %s21
      %p23 = scmp.eq.s32.totalorder %s22, 0
      %s25 = sadd.s32 %s24, 1
      %s26 = scalar_select %p23, %s24, %s25
      %p29 = pneg %p23
      %p30 = scmp.eq.s32.totalorder %s14, 1
      %p31 = por %p29, %p30
      %p32 = scmp.ne.s32.totalorder %s24, %s27
      %p33 = scmp.eq.s32.totalorder %s14, 0
      %p34 = por %p32, %p33
      %p35 = scmp.ne.s32.totalorder %s24, %s27
      %p36 = scmp.eq.s32.totalorder %s19, 1
      %p37 = por %p35, %p36
      %p38 = scmp.ne.s32.totalorder %s27, %s28
      %p39 = scmp.eq.s32.totalorder %s19, 0
      %p40 = por %p38, %p39
      %p41 = scmp.ne.s32.totalorder %s27, %s28
      %p42 = scmp.eq.s32.totalorder %s20, 1
      %p43 = por %p41, %p42
      %p45 = scmp.ne.s32.totalorder %s28, %s44
      %p46 = scmp.eq.s32.totalorder %s20, 0
      %p47 = por %p45, %p46
      %s49 = sadd.s32 %s48, 1
      %p52 = scmp.eq.s32.totalorder %s14, 1
      %p53 = scmp.ne.s32.totalorder %s48, %s50
      %p54 = scmp.eq.s32.totalorder %s14, 0
      %p55 = por %p53, %p54
      %p56 = scmp.ne.s32.totalorder %s48, %s50
      %p57 = scmp.eq.s32.totalorder %s19, 1
      %p58 = por %p56, %p57
      %p59 = scmp.ne.s32.totalorder %s50, %s51
      %p60 = scmp.eq.s32.totalorder %s19, 0
      %p61 = por %p59, %p60
      %p62 = scmp.ne.s32.totalorder %s50, %s51
      %p63 = scmp.eq.s32.totalorder %s20, 1
      %p64 = por %p62, %p63
      %p66 = scmp.ne.s32.totalorder %s51, %s65
      %p67 = scmp.eq.s32.totalorder %s20, 0
      %p68 = por %p66, %p67
      %s70 = sadd.s32 %s69, 1
      %p73 = scmp.eq.s32.totalorder %s14, 1
      %p74 = scmp.ne.s32.totalorder %s69, %s71
      %p75 = scmp.eq.s32.totalorder %s14, 0
      %p76 = por %p74, %p75
      %p77 = scmp.ne.s32.totalorder %s69, %s71
      %p78 = scmp.eq.s32.totalorder %s19, 1
      %p79 = por %p77, %p78
      %p80 = scmp.ne.s32.totalorder %s71, %s72
      %p81 = scmp.eq.s32.totalorder %s19, 0
      %p82 = por %p80, %p81
      %p83 = scmp.ne.s32.totalorder %s71, %s72
      %p84 = scmp.eq.s32.totalorder %s20, 1
      %p85 = por %p83, %p84
      %p87 = scmp.ne.s32.totalorder %s72, %s86
      %p88 = scmp.eq.s32.totalorder %s20, 0
      %p89 = por %p87, %p88
      %s91 = sadd.s32 %s90, 1
      %p94 = scmp.eq.s32.totalorder %s14, 1
      %p95 = scmp.ne.s32.totalorder %s90, %s92
      %p96 = scmp.eq.s32.totalorder %s14, 0
      %p97 = por %p95, %p96
      %p98 = scmp.ne.s32.totalorder %s90, %s92
      %p99 = scmp.eq.s32.totalorder %s19, 1
      %p100 = por %p98, %p99
      %p101 = scmp.ne.s32.totalorder %s92, %s93
      %p102 = scmp.eq.s32.totalorder %s19, 0
      %p103 = por %p101, %p102
      %p104 = scmp.ne.s32.totalorder %s92, %s93
      %p105 = scmp.eq.s32.totalorder %s20, 1
      %p106 = por %p104, %p105
      %p108 = scmp.ne.s32.totalorder %s93, %s107
      %p109 = scmp.eq.s32.totalorder %s20, 0
      %p110 = por %p108, %p109
      %s112 = sadd.s32 %s111, 1
      %p115 = scmp.eq.s32.totalorder %s14, 1
      %p116 = scmp.ne.s32.totalorder %s111, %s113
      %p117 = scmp.eq.s32.totalorder %s14, 0
      %p118 = por %p116, %p117
      %p119 = scmp.ne.s32.totalorder %s111, %s113
      %p120 = scmp.eq.s32.totalorder %s19, 1
      %p121 = por %p119, %p120
      %p122 = scmp.ne.s32.totalorder %s113, %s114
      %p123 = scmp.eq.s32.totalorder %s19, 0
      %p124 = por %p122, %p123
      %p125 = scmp.ne.s32.totalorder %s113, %s114
      %p126 = scmp.eq.s32.totalorder %s20, 1
      %p127 = por %p125, %p126
      %p129 = scmp.ne.s32.totalorder %s114, %s128
      %p130 = scmp.eq.s32.totalorder %s20, 0
      %p131 = por %p129, %p130
      %s132 = ssub.s32 %s14, %s21
      %p133 = scmp.eq.s32.totalorder %s132, 0
      %s135 = sadd.s32 %s134, 1
      %s136 = scalar_select %p133, %s134, %s135
      %p139 = pneg %p133
      %p140 = scmp.eq.s32.totalorder %s14, 1
      %p141 = por %p139, %p140
      %p142 = scmp.ne.s32.totalorder %s134, %s137
      %p143 = scmp.eq.s32.totalorder %s14, 0
      %p144 = por %p142, %p143
      %p145 = scmp.ne.s32.totalorder %s134, %s137
      %p146 = scmp.eq.s32.totalorder %s19, 1
      %p147 = por %p145, %p146
      %p148 = scmp.ne.s32.totalorder %s137, %s138
      %p149 = scmp.eq.s32.totalorder %s19, 0
      %p150 = por %p148, %p149
      %p151 = scmp.ne.s32.totalorder %s137, %s138
      %p152 = scmp.eq.s32.totalorder %s20, 1
      %p153 = por %p151, %p152
      %p155 = scmp.ne.s32.totalorder %s138, %s154
      %p156 = scmp.eq.s32.totalorder %s20, 0
      %p157 = por %p155, %p156
      %p158 = scmp.le.s32.totalorder 1, %s14
      %p159 = scmp.lt.s32.totalorder %s14, 3
      %p160 = pnand %p158, %p159
      %p161 = pneg %p160
      // Predicated region
      $region9: #{tpu_custom_call.1} parent=5 // pred_check
        _
      $region10: #{tpu_custom_call.1} parent=5 // pred_check_branch
        %163 = sbr.rel (%p160) target = $region12
      $region11: #{tpu_custom_call.1} parent=5 // pred_region
        %s164 = ssub.s32 %s14, 1
        // Predicated region
        $region13: #{tpu_custom_call.1} parent=11 // pred_check
          %p165 = pneg %p61
        $region14: #{tpu_custom_call.1} parent=11 // pred_check_branch
          %167 = sbr.rel (%p165) target = $region16
        $region15: #{tpu_custom_call.1} parent=11 // pred_region
          _
        $region16: #{tpu_custom_call.1} parent=11 // pred_fallthru
          _
        // Predicated region
        $region17: #{tpu_custom_call.1} parent=11 // pred_check
          %p168 = pneg %p82
        $region18: #{tpu_custom_call.1} parent=11 // pred_check_branch
          %170 = sbr.rel (%p168) target = $region20
        $region19: #{tpu_custom_call.1} parent=11 // pred_region
          _
        $region20: #{tpu_custom_call.1} parent=11 // pred_fallthru
          _
        // Predicated region
        $region21: #{tpu_custom_call.1} parent=11 // pred_check
          %p171 = pneg %p103
        $region22: #{tpu_custom_call.1} parent=11 // pred_check_branch
          %173 = sbr.rel (%p171) target = $region24
        $region23: #{tpu_custom_call.1} parent=11 // pred_region
          _
        $region24: #{tpu_custom_call.1} parent=11 // pred_fallthru
          _
        // Predicated region
        $region25: #{tpu_custom_call.1} parent=11 // pred_check
          %p174 = pneg %p124
        $region26: #{tpu_custom_call.1} parent=11 // pred_check_branch
          %176 = sbr.rel (%p174) target = $region28
        $region27: #{tpu_custom_call.1} parent=11 // pred_region
          _
        $region28: #{tpu_custom_call.1} parent=11 // pred_fallthru
          _
      $region12: #{tpu_custom_call.1} parent=5 // pred_fallthru
        _
      %p177 = scmp.lt.s32.totalorder %s14, 2
      // Predicated region
      $region29: #{tpu_custom_call.1} parent=5 // pred_check
        %p178 = pneg %p177
      $region30: #{tpu_custom_call.1} parent=5 // pred_check_branch
        %180 = sbr.rel (%p178) target = $region32
      $region31: #{tpu_custom_call.1} parent=5 // pred_region
        // Predicated region
        $region33: #{tpu_custom_call.1} parent=31 // pred_check
          %p181 = pneg %p34
        $region34: #{tpu_custom_call.1} parent=31 // pred_check_branch
          %183 = sbr.rel (%p181) target = $region36
        $region35: #{tpu_custom_call.1} parent=31 // pred_region
          %s184 = smul.u32 4, %s14
          %p185 = scmp.lt.s32.totalorder %s184, 7
          %s186 = scalar_select %p185, %s184, 7
          %s187 = smul.addr %s186, 2
          %s188 = smul.addr %s187, 8
          %s189 = scalar_lea.vmem %s0, %s188
          %s190 = smul.u32 4, %s14
        $region36: #{tpu_custom_call.1} parent=31 // pred_fallthru
          _
      $region32: #{tpu_custom_call.1} parent=5 // pred_fallthru
        _
      %p191 = scmp.le.s32.totalorder 1, %s14
      %p192 = scmp.lt.s32.totalorder %s14, 3
      %p193 = pnand %p191, %p192
      %p194 = pneg %p193
      // Predicated region
      $region37: #{tpu_custom_call.1} parent=5 // pred_check
        _
      $region38: #{tpu_custom_call.1} parent=5 // pred_check_branch
        %196 = sbr.rel (%p193) target = $region40
      $region39: #{tpu_custom_call.1} parent=5 // pred_region
        %s197 = ssub.s32 %s14, 1
        %s198 = smul.u32 4, %s19
        %p199 = scmp.lt.s32.totalorder %s198, 7
        %s200 = scalar_select %p199, %s198, 7
        %s201 = smul.addr %s200, 2
        %s202 = smul.addr %s201, 8
        %s203 = scalar_lea.vmem %s0, %s202
        %p204 = pneg %p40
        %p205 = pneg %p37
        %p206 = pneg %p61
        %p207 = pneg %p58
        %p208 = pneg %p82
        %p209 = pneg %p79
        %p210 = pneg %p103
        %p211 = pneg %p100
        %p212 = pneg %p124
        %p213 = pneg %p121
        %p214 = pneg %p150
        %p215 = pneg %p147
        %s216 = sand.u32 %s137, 1
        %s217 = scalar_lea.sflag [#allocation3], %s216
        %s218 = sand.u32 %s137, 1
        %s219 = smul.addr %s218, 96
        %s220 = scalar_lea.vmem [#allocation2], %s219
        %s221 = smul.u32 4, %s19
        %p222 = scmp.lt.s32.totalorder %s221, 7
        %s223 = scalar_select %p222, %s221, 7
        %s224 = smul.addr %s223, 2
        %s225 = smul.addr %s224, 8
        %s226 = scalar_lea.vmem %s0, %s225
        %s227 = smul.u32 4, %s19
        %s228 = smul.u32 4, %s19
        %v229 = vld [vmem:[%s226] sm:$0xff]
        %v230 = vld [vmem:[%s226 + $0x8] sm:$0xff]
        %v231 = vld [vmem:[%s226 + $0x10] sm:$0xff]
        %v232 = vld [vmem:[%s226 + $0x18] sm:$0xff]
        %v233 = vld [vmem:[%s226 + $0x20] sm:$0xff]
        %v234 = vld [vmem:[%s226 + $0x28] sm:$0xff]
        %v235 = vld [vmem:[%s226 + $0x30] sm:$0xff]
        %v236 = vld [vmem:[%s226 + $0x38] sm:$0xff]
        %v237 = vld [vmem:[%s1] sm:$0xff]
        %v238 = vld [vmem:[%s1 + $0x8] sm:$0xff]
        %v239 = vld [vmem:[%s1 + $0x10] sm:$0xff]
        %v240 = vld [vmem:[%s1 + $0x18] sm:$0xff]
        %v241 = vld [vmem:[%s1 + $0x20] sm:$0xff]
        %v242 = vld [vmem:[%s1 + $0x28] sm:$0xff]
        %v243 = vld [vmem:[%s1 + $0x30] sm:$0xff]
        %v244 = vld [vmem:[%s1 + $0x38] sm:$0xff]
        %v245 = vld [vmem:[%s1 + $0x40] sm:$0xff]
        %v246 = vld [vmem:[%s1 + $0x48] sm:$0xff]
        %v247 = vld [vmem:[%s1 + $0x50] sm:$0xff]
        %v248 = vld [vmem:[%s1 + $0x58] sm:$0xff]
        %v249 = vld [vmem:[%s1 + $0x60] sm:$0xff]
        %v250 = vld [vmem:[%s1 + $0x68] sm:$0xff]
        %v251 = vld [vmem:[%s1 + $0x70] sm:$0xff]
        %v252 = vld [vmem:[%s1 + $0x78] sm:$0xff]
        %v253 = vld [vmem:[%s1 + $0x80] sm:$0xff]
        %v254 = vld [vmem:[%s1 + $0x88] sm:$0xff]
        %v255 = vld [vmem:[%s1 + $0x90] sm:$0xff]
        %v256 = vld [vmem:[%s1 + $0x98] sm:$0xff]
        %v257 = vld [vmem:[%s1 + $0xa0] sm:$0xff]
        %v258 = vld [vmem:[%s1 + $0xa8] sm:$0xff]
        %v259 = vld [vmem:[%s1 + $0xb0] sm:$0xff]
        %v260 = vld [vmem:[%s1 + $0xb8] sm:$0xff]
        %v261 = vld [vmem:[%s1 + $0xc0] sm:$0xff]
        %v262 = vld [vmem:[%s1 + $0xc8] sm:$0xff]
        %v263 = vld [vmem:[%s1 + $0xd0] sm:$0xff]
        %v264 = vld [vmem:[%s1 + $0xd8] sm:$0xff]
        %v265 = vld [vmem:[%s1 + $0xe0] sm:$0xff]
        %v266 = vld [vmem:[%s1 + $0xe8] sm:$0xff]
        %v267 = vld [vmem:[%s1 + $0xf0] sm:$0xff]
        %v268 = vld [vmem:[%s1 + $0xf8] sm:$0xff]
        %v269 = vld [vmem:[%s1 + $0x100] sm:$0xff]
        %v270 = vld [vmem:[%s1 + $0x108] sm:$0xff]
        %v271 = vld [vmem:[%s1 + $0x110] sm:$0xff]
        %v272 = vld [vmem:[%s1 + $0x118] sm:$0xff]
        %v273 = vld [vmem:[%s1 + $0x120] sm:$0xff]
        %v274 = vld [vmem:[%s1 + $0x128] sm:$0xff]
        %v275 = vld [vmem:[%s1 + $0x130] sm:$0xff]
        %v276 = vld [vmem:[%s1 + $0x138] sm:$0xff]
        %v277 = vld [vmem:[%s1 + $0x140] sm:$0xff]
        %v278 = vld [vmem:[%s1 + $0x148] sm:$0xff]
        %v279 = vld [vmem:[%s1 + $0x150] sm:$0xff]
        %v280 = vld [vmem:[%s1 + $0x158] sm:$0xff]
        %v281 = vld [vmem:[%s1 + $0x160] sm:$0xff]
        %v282 = vld [vmem:[%s1 + $0x168] sm:$0xff]
        %v283 = vld [vmem:[%s1 + $0x170] sm:$0xff]
        %v284 = vld [vmem:[%s1 + $0x178] sm:$0xff]
        %v285 = vld [vmem:[%s1 + $0x180] sm:$0xff]
        %v286 = vld [vmem:[%s1 + $0x188] sm:$0xff]
        %v287 = vld [vmem:[%s1 + $0x190] sm:$0xff]
        %v288 = vld [vmem:[%s1 + $0x198] sm:$0xff]
        %v289 = vld [vmem:[%s1 + $0x1a0] sm:$0xff]
        %v290 = vld [vmem:[%s1 + $0x1a8] sm:$0xff]
        %v291 = vld [vmem:[%s1 + $0x1b0] sm:$0xff]
        %v292 = vld [vmem:[%s1 + $0x1b8] sm:$0xff]
        %v293 = vld [vmem:[%s1 + $0x1c0] sm:$0xff]
        %v294 = vld [vmem:[%s1 + $0x1c8] sm:$0xff]
        %v295 = vld [vmem:[%s1 + $0x1d0] sm:$0xff]
        %v296 = vld [vmem:[%s1 + $0x1d8] sm:$0xff]
        %v297 = vld [vmem:[%s1 + $0x1e0] sm:$0xff]
        %v298 = vld [vmem:[%s1 + $0x1e8] sm:$0xff]
        %v299 = vld [vmem:[%s1 + $0x1f0] sm:$0xff]
        %v300 = vld [vmem:[%s1 + $0x1f8] sm:$0xff]
        %v301 = vld [vmem:[%s1 + $0x200] sm:$0xff]
        %v302 = vld [vmem:[%s1 + $0x208] sm:$0xff]
        %v303 = vld [vmem:[%s1 + $0x210] sm:$0xff]
        %v304 = vld [vmem:[%s1 + $0x218] sm:$0xff]
        %v305 = vld [vmem:[%s1 + $0x220] sm:$0xff]
        %v306 = vld [vmem:[%s1 + $0x228] sm:$0xff]
        %v307 = vld [vmem:[%s1 + $0x230] sm:$0xff]
        %v308 = vld [vmem:[%s1 + $0x238] sm:$0xff]
        %v309 = vld [vmem:[%s1 + $0x240] sm:$0xff]
        %v310 = vld [vmem:[%s1 + $0x248] sm:$0xff]
        %v311 = vld [vmem:[%s1 + $0x250] sm:$0xff]
        %v312 = vld [vmem:[%s1 + $0x258] sm:$0xff]
        %v313 = vld [vmem:[%s1 + $0x260] sm:$0xff]
        %v314 = vld [vmem:[%s1 + $0x268] sm:$0xff]
        %v315 = vld [vmem:[%s1 + $0x270] sm:$0xff]
        %v316 = vld [vmem:[%s1 + $0x278] sm:$0xff]
        %v317 = vld [vmem:[%s1 + $0x280] sm:$0xff]
        %v318 = vld [vmem:[%s1 + $0x288] sm:$0xff]
        %v319 = vld [vmem:[%s1 + $0x290] sm:$0xff]
        %v320 = vld [vmem:[%s1 + $0x298] sm:$0xff]
        %v321 = vld [vmem:[%s1 + $0x2a0] sm:$0xff]
        %v322 = vld [vmem:[%s1 + $0x2a8] sm:$0xff]
        %v323 = vld [vmem:[%s1 + $0x2b0] sm:$0xff]
        %v324 = vld [vmem:[%s1 + $0x2b8] sm:$0xff]
        %v325 = vld [vmem:[%s1 + $0x2c0] sm:$0xff]
        %v326 = vld [vmem:[%s1 + $0x2c8] sm:$0xff]
        %v327 = vld [vmem:[%s1 + $0x2d0] sm:$0xff]
        %v328 = vld [vmem:[%s1 + $0x2d8] sm:$0xff]
        %v329 = vld [vmem:[%s1 + $0x2e0] sm:$0xff]
        %v330 = vld [vmem:[%s1 + $0x2e8] sm:$0xff]
        %v331 = vld [vmem:[%s1 + $0x2f0] sm:$0xff]
        %v332 = vld [vmem:[%s1 + $0x2f8] sm:$0xff]
        %v333 = vld [vmem:[%s1 + $0x300] sm:$0xff]
        %v334 = vld [vmem:[%s1 + $0x308] sm:$0xff]
        %v335 = vld [vmem:[%s1 + $0x310] sm:$0xff]
        %v336 = vld [vmem:[%s1 + $0x318] sm:$0xff]
        %v337 = vld [vmem:[%s1 + $0x320] sm:$0xff]
        %v338 = vld [vmem:[%s1 + $0x328] sm:$0xff]
        %v339 = vld [vmem:[%s1 + $0x330] sm:$0xff]
        %v340 = vld [vmem:[%s1 + $0x338] sm:$0xff]
        %v341 = vld [vmem:[%s1 + $0x340] sm:$0xff]
        %v342 = vld [vmem:[%s1 + $0x348] sm:$0xff]
        %v343 = vld [vmem:[%s1 + $0x350] sm:$0xff]
        %v344 = vld [vmem:[%s1 + $0x358] sm:$0xff]
        %v345 = vld [vmem:[%s1 + $0x360] sm:$0xff]
        %v346 = vld [vmem:[%s1 + $0x368] sm:$0xff]
        %v347 = vld [vmem:[%s1 + $0x370] sm:$0xff]
        %v348 = vld [vmem:[%s1 + $0x378] sm:$0xff]
        %v349 = vld [vmem:[%s1 + $0x380] sm:$0xff]
        %v350 = vld [vmem:[%s1 + $0x388] sm:$0xff]
        %v351 = vld [vmem:[%s1 + $0x390] sm:$0xff]
        %v352 = vld [vmem:[%s1 + $0x398] sm:$0xff]
        %v353 = vld [vmem:[%s1 + $0x3a0] sm:$0xff]
        %v354 = vld [vmem:[%s1 + $0x3a8] sm:$0xff]
        %v355 = vld [vmem:[%s1 + $0x3b0] sm:$0xff]
        %v356 = vld [vmem:[%s1 + $0x3b8] sm:$0xff]
        %v357 = vld [vmem:[%s1 + $0x3c0] sm:$0xff]
        %v358 = vld [vmem:[%s1 + $0x3c8] sm:$0xff]
        %v359 = vld [vmem:[%s1 + $0x3d0] sm:$0xff]
        %v360 = vld [vmem:[%s1 + $0x3d8] sm:$0xff]
        %v361 = vld [vmem:[%s1 + $0x3e0] sm:$0xff]
        %v362 = vld [vmem:[%s1 + $0x3e8] sm:$0xff]
        %v363 = vld [vmem:[%s1 + $0x3f0] sm:$0xff]
        %v364 = vld [vmem:[%s1 + $0x3f8] sm:$0xff]
        %v365 = vld [vmem:[%s2] ss:$4 sm:$0xf]
        %v367 = vperm.slane %v365, 0
        %v368 = vperm.slane %v365, 1
        %v369 = vperm.slane %v365, 2
        %v370 = vperm.slane %v365, 3
        %375 = vmatpush.msra.mxu0 %v297
        %376 = vmatpush.msra.mxu0 %v293
        %377 = vmatpush.msra.mxu0 %v289
        %378 = vmatpush.msra.mxu0 %v285
        %379 = vmatpush.msra.mxu0 %v281
        %380 = vmatpush.msra.mxu0 %v277
        %381 = vmatpush.msra.mxu0 %v273
        %382 = vmatpush.msra.mxu0 %v269
        %383 = vmatpush.msra.mxu0 %v265
        %384 = vmatpush.msra.mxu0 %v261
        %385 = vmatpush.msra.mxu0 %v257
        %386 = vmatpush.msra.mxu0 %v253
        %387 = vmatpush.msra.mxu0 %v249
        %388 = vmatpush.msra.mxu0 %v245
        %389 = vmatpush.msra.mxu0 %v241
        %390 = vmatpush.msra.mxu0 %v237
        %391 = vmatmul.f32.gmra.mxu0 %v229
        %v392 = vpop.f32.mrf.mxu0
        %v393 = vadd.f32 %v367, %v392
        %394 = vmatmul.f32.gmra.mxu0 %v231
        %v395 = vpop.f32.mrf.mxu0
        %v396 = vadd.f32 %v367, %v395
        %397 = vmatmul.f32.gmra.mxu0 %v233
        %v398 = vpop.f32.mrf.mxu0
        %v399 = vadd.f32 %v367, %v398
        %400 = vmatmul.f32.gmra.mxu0 %v235
        %v401 = vpop.f32.mrf.mxu0
        %v402 = vadd.f32 %v367, %v401
        %403 = vdwg.mxu0
        %404 = vmatpush.msra.mxu0 %v361
        %405 = vmatpush.msra.mxu0 %v357
        %406 = vmatpush.msra.mxu0 %v353
        %407 = vmatpush.msra.mxu0 %v349
        %408 = vmatpush.msra.mxu0 %v345
        %409 = vmatpush.msra.mxu0 %v341
        %410 = vmatpush.msra.mxu0 %v337
        %411 = vmatpush.msra.mxu0 %v333
        %412 = vmatpush.msra.mxu0 %v329
        %413 = vmatpush.msra.mxu0 %v325
        %414 = vmatpush.msra.mxu0 %v321
        %415 = vmatpush.msra.mxu0 %v317
        %416 = vmatpush.msra.mxu0 %v313
        %417 = vmatpush.msra.mxu0 %v309
        %418 = vmatpush.msra.mxu0 %v305
        %419 = vmatpush.msra.mxu0 %v301
        %420 = vmatmul.f32.gmra.mxu0 %v230
        %v421 = vpop.f32.mrf.mxu0
        %v422 = vadd.f32 %v393, %v421
        %423 = vmatmul.f32.gmra.mxu0 %v232
        %v424 = vpop.f32.mrf.mxu0
        %v425 = vadd.f32 %v396, %v424
        %426 = vmatmul.f32.gmra.mxu0 %v234
        %v427 = vpop.f32.mrf.mxu0
        %v428 = vadd.f32 %v399, %v427
        %429 = vmatmul.f32.gmra.mxu0 %v236
        %v430 = vpop.f32.mrf.mxu0
        %v431 = vadd.f32 %v402, %v430
        %432 = vdwg.mxu0
        %433 = vmatpush.msra.mxu0 %v298
        %434 = vmatpush.msra.mxu0 %v294
        %435 = vmatpush.msra.mxu0 %v290
        %436 = vmatpush.msra.mxu0 %v286
        %437 = vmatpush.msra.mxu0 %v282
        %438 = vmatpush.msra.mxu0 %v278
        %439 = vmatpush.msra.mxu0 %v274
        %440 = vmatpush.msra.mxu0 %v270
        %441 = vmatpush.msra.mxu0 %v266
        %442 = vmatpush.msra.mxu0 %v262
        %443 = vmatpush.msra.mxu0 %v258
        %444 = vmatpush.msra.mxu0 %v254
        %445 = vmatpush.msra.mxu0 %v250
        %446 = vmatpush.msra.mxu0 %v246
        %447 = vmatpush.msra.mxu0 %v242
        %448 = vmatpush.msra.mxu0 %v238
        %449 = vmatmul.f32.gmra.mxu0 %v229
        %v450 = vpop.f32.mrf.mxu0
        %v451 = vadd.f32 %v368, %v450
        %452 = vmatmul.f32.gmra.mxu0 %v231
        %v453 = vpop.f32.mrf.mxu0
        %v454 = vadd.f32 %v368, %v453
        %455 = vmatmul.f32.gmra.mxu0 %v233
        %v456 = vpop.f32.mrf.mxu0
        %v457 = vadd.f32 %v368, %v456
        %458 = vmatmul.f32.gmra.mxu0 %v235
        %v459 = vpop.f32.mrf.mxu0
        %v460 = vadd.f32 %v368, %v459
        %461 = vdwg.mxu0
        %462 = vmatpush.msra.mxu0 %v362
        %463 = vmatpush.msra.mxu0 %v358
        %464 = vmatpush.msra.mxu0 %v354
        %465 = vmatpush.msra.mxu0 %v350
        %466 = vmatpush.msra.mxu0 %v346
        %467 = vmatpush.msra.mxu0 %v342
        %468 = vmatpush.msra.mxu0 %v338
        %469 = vmatpush.msra.mxu0 %v334
        %470 = vmatpush.msra.mxu0 %v330
        %471 = vmatpush.msra.mxu0 %v326
        %472 = vmatpush.msra.mxu0 %v322
        %473 = vmatpush.msra.mxu0 %v318
        %474 = vmatpush.msra.mxu0 %v314
        %475 = vmatpush.msra.mxu0 %v310
        %476 = vmatpush.msra.mxu0 %v306
        %477 = vmatpush.msra.mxu0 %v302
        %478 = vmatmul.f32.gmra.mxu0 %v230
        %v479 = vpop.f32.mrf.mxu0
        %v480 = vadd.f32 %v451, %v479
        %481 = vmatmul.f32.gmra.mxu0 %v232
        %v482 = vpop.f32.mrf.mxu0
        %v483 = vadd.f32 %v454, %v482
        %484 = vmatmul.f32.gmra.mxu0 %v234
        %v485 = vpop.f32.mrf.mxu0
        %v486 = vadd.f32 %v457, %v485
        %487 = vmatmul.f32.gmra.mxu0 %v236
        %v488 = vpop.f32.mrf.mxu0
        %v489 = vadd.f32 %v460, %v488
        %490 = vdwg.mxu0
        %491 = vmatpush.msra.mxu0 %v299
        %492 = vmatpush.msra.mxu0 %v295
        %493 = vmatpush.msra.mxu0 %v291
        %494 = vmatpush.msra.mxu0 %v287
        %495 = vmatpush.msra.mxu0 %v283
        %496 = vmatpush.msra.mxu0 %v279
        %497 = vmatpush.msra.mxu0 %v275
        %498 = vmatpush.msra.mxu0 %v271
        %499 = vmatpush.msra.mxu0 %v267
        %500 = vmatpush.msra.mxu0 %v263
        %501 = vmatpush.msra.mxu0 %v259
        %502 = vmatpush.msra.mxu0 %v255
        %503 = vmatpush.msra.mxu0 %v251
        %504 = vmatpush.msra.mxu0 %v247
        %505 = vmatpush.msra.mxu0 %v243
        %506 = vmatpush.msra.mxu0 %v239
        %507 = vmatmul.f32.gmra.mxu0 %v229
        %v508 = vpop.f32.mrf.mxu0
        %v509 = vadd.f32 %v369, %v508
        %510 = vmatmul.f32.gmra.mxu0 %v231
        %v511 = vpop.f32.mrf.mxu0
        %v512 = vadd.f32 %v369, %v511
        %513 = vmatmul.f32.gmra.mxu0 %v233
        %v514 = vpop.f32.mrf.mxu0
        %v515 = vadd.f32 %v369, %v514
        %516 = vmatmul.f32.gmra.mxu0 %v235
        %v517 = vpop.f32.mrf.mxu0
        %v518 = vadd.f32 %v369, %v517
        %519 = vdwg.mxu0
        %520 = vmatpush.msra.mxu0 %v363
        %521 = vmatpush.msra.mxu0 %v359
        %522 = vmatpush.msra.mxu0 %v355
        %523 = vmatpush.msra.mxu0 %v351
        %524 = vmatpush.msra.mxu0 %v347
        %525 = vmatpush.msra.mxu0 %v343
        %526 = vmatpush.msra.mxu0 %v339
        %527 = vmatpush.msra.mxu0 %v335
        %528 = vmatpush.msra.mxu0 %v331
        %529 = vmatpush.msra.mxu0 %v327
        %530 = vmatpush.msra.mxu0 %v323
        %531 = vmatpush.msra.mxu0 %v319
        %532 = vmatpush.msra.mxu0 %v315
        %533 = vmatpush.msra.mxu0 %v311
        %534 = vmatpush.msra.mxu0 %v307
        %535 = vmatpush.msra.mxu0 %v303
        %536 = vmatmul.f32.gmra.mxu0 %v230
        %v537 = vpop.f32.mrf.mxu0
        %v538 = vadd.f32 %v509, %v537
        %539 = vmatmul.f32.gmra.mxu0 %v232
        %v540 = vpop.f32.mrf.mxu0
        %v541 = vadd.f32 %v512, %v540
        %542 = vmatmul.f32.gmra.mxu0 %v234
        %v543 = vpop.f32.mrf.mxu0
        %v544 = vadd.f32 %v515, %v543
        %545 = vmatmul.f32.gmra.mxu0 %v236
        %v546 = vpop.f32.mrf.mxu0
        %v547 = vadd.f32 %v518, %v546
        %548 = vdwg.mxu0
        %549 = vmatpush.msra.mxu0 %v300
        %550 = vmatpush.msra.mxu0 %v296
        %551 = vmatpush.msra.mxu0 %v292
        %552 = vmatpush.msra.mxu0 %v288
        %553 = vmatpush.msra.mxu0 %v284
        %554 = vmatpush.msra.mxu0 %v280
        %555 = vmatpush.msra.mxu0 %v276
        %556 = vmatpush.msra.mxu0 %v272
        %557 = vmatpush.msra.mxu0 %v268
        %558 = vmatpush.msra.mxu0 %v264
        %559 = vmatpush.msra.mxu0 %v260
        %560 = vmatpush.msra.mxu0 %v256
        %561 = vmatpush.msra.mxu0 %v252
        %562 = vmatpush.msra.mxu0 %v248
        %563 = vmatpush.msra.mxu0 %v244
        %564 = vmatpush.msra.mxu0 %v240
        %565 = vmatmul.f32.gmra.mxu0 %v229
        %v566 = vpop.f32.mrf.mxu0
        %v567 = vadd.f32 %v370, %v566
        %568 = vmatmul.f32.gmra.mxu0 %v231
        %v569 = vpop.f32.mrf.mxu0
        %v570 = vadd.f32 %v370, %v569
        %571 = vmatmul.f32.gmra.mxu0 %v233
        %v572 = vpop.f32.mrf.mxu0
        %v573 = vadd.f32 %v370, %v572
        %574 = vmatmul.f32.gmra.mxu0 %v235
        %v575 = vpop.f32.mrf.mxu0
        %v576 = vadd.f32 %v370, %v575
        %577 = vdwg.mxu0
        %578 = vmatpush.msra.mxu0 %v364
        %579 = vmatpush.msra.mxu0 %v360
        %580 = vmatpush.msra.mxu0 %v356
        %581 = vmatpush.msra.mxu0 %v352
        %582 = vmatpush.msra.mxu0 %v348
        %583 = vmatpush.msra.mxu0 %v344
        %584 = vmatpush.msra.mxu0 %v340
        %585 = vmatpush.msra.mxu0 %v336
        %586 = vmatpush.msra.mxu0 %v332
        %587 = vmatpush.msra.mxu0 %v328
        %588 = vmatpush.msra.mxu0 %v324
        %589 = vmatpush.msra.mxu0 %v320
        %590 = vmatpush.msra.mxu0 %v316
        %591 = vmatpush.msra.mxu0 %v312
        %592 = vmatpush.msra.mxu0 %v308
        %593 = vmatpush.msra.mxu0 %v304
        %594 = vmatmul.f32.gmra.mxu0 %v230
        %v595 = vpop.f32.mrf.mxu0
        %v596 = vadd.f32 %v567, %v595
        %597 = vmatmul.f32.gmra.mxu0 %v232
        %v598 = vpop.f32.mrf.mxu0
        %v599 = vadd.f32 %v570, %v598
        %600 = vmatmul.f32.gmra.mxu0 %v234
        %v601 = vpop.f32.mrf.mxu0
        %v602 = vadd.f32 %v573, %v601
        %603 = vmatmul.f32.gmra.mxu0 %v236
        %v604 = vpop.f32.mrf.mxu0
        %v605 = vadd.f32 %v576, %v604
        %606 = vdwg.mxu0
        %v607 = vmul.f32 %v422, %v422
        %v608 = vmul.f32 %v480, %v480
        %v609 = vmul.f32 %v538, %v538
        %v610 = vmul.f32 %v425, %v425
        %v611 = vmul.f32 %v483, %v483
        %v612 = vmul.f32 %v541, %v541
        %v613 = vmul.f32 %v428, %v428
        %v614 = vmul.f32 %v486, %v486
        %v615 = vmul.f32 %v544, %v544
        %v616 = vmul.f32 %v431, %v431
        %v617 = vmul.f32 %v489, %v489
        %v618 = vmul.f32 %v547, %v547
        %v619 = vld [vmem:[%s3] sm:$0xff]
        %v620 = vld [vmem:[%s3 + $0x8] sm:$0xff]
        %v621 = vld [vmem:[%s3 + $0x10] sm:$0xff]
        %v622 = vld [vmem:[%s3 + $0x18] sm:$0xff]
        %v623 = vld [vmem:[%s3 + $0x20] sm:$0xff]
        %v624 = vld [vmem:[%s3 + $0x28] sm:$0xff]
        %v625 = vld [vmem:[%s3 + $0x30] sm:$0xff]
        %v626 = vld [vmem:[%s3 + $0x38] sm:$0xff]
        %v627 = vld [vmem:[%s3 + $0x40] sm:$0xff]
        %v628 = vld [vmem:[%s3 + $0x48] sm:$0xff]
        %v629 = vld [vmem:[%s3 + $0x50] sm:$0xff]
        %v630 = vld [vmem:[%s3 + $0x58] sm:$0xff]
        %v631 = vld [vmem:[%s3 + $0x60] sm:$0xff]
        %v632 = vld [vmem:[%s3 + $0x68] sm:$0xff]
        %v633 = vld [vmem:[%s3 + $0x70] sm:$0xff]
        %v634 = vld [vmem:[%s3 + $0x78] sm:$0xff]
        %v635 = vld [vmem:[%s3 + $0x80] sm:$0xff]
        %v636 = vld [vmem:[%s3 + $0x88] sm:$0xff]
        %v637 = vld [vmem:[%s3 + $0x90] sm:$0xff]
        %v638 = vld [vmem:[%s3 + $0x98] sm:$0xff]
        %v639 = vld [vmem:[%s3 + $0xa0] sm:$0xff]
        %v640 = vld [vmem:[%s3 + $0xa8] sm:$0xff]
        %v641 = vld [vmem:[%s3 + $0xb0] sm:$0xff]
        %v642 = vld [vmem:[%s3 + $0xb8] sm:$0xff]
        %v643 = vld [vmem:[%s3 + $0xc0] sm:$0xff]
        %v644 = vld [vmem:[%s3 + $0xc8] sm:$0xff]
        %v645 = vld [vmem:[%s3 + $0xd0] sm:$0xff]
        %v646 = vld [vmem:[%s3 + $0xd8] sm:$0xff]
        %v647 = vld [vmem:[%s3 + $0xe0] sm:$0xff]
        %v648 = vld [vmem:[%s3 + $0xe8] sm:$0xff]
        %v649 = vld [vmem:[%s3 + $0xf0] sm:$0xff]
        %v650 = vld [vmem:[%s3 + $0xf8] sm:$0xff]
        %v651 = vld [vmem:[%s3 + $0x100] sm:$0xff]
        %v652 = vld [vmem:[%s3 + $0x108] sm:$0xff]
        %v653 = vld [vmem:[%s3 + $0x110] sm:$0xff]
        %v654 = vld [vmem:[%s3 + $0x118] sm:$0xff]
        %v655 = vld [vmem:[%s3 + $0x120] sm:$0xff]
        %v656 = vld [vmem:[%s3 + $0x128] sm:$0xff]
        %v657 = vld [vmem:[%s3 + $0x130] sm:$0xff]
        %v658 = vld [vmem:[%s3 + $0x138] sm:$0xff]
        %v659 = vld [vmem:[%s3 + $0x140] sm:$0xff]
        %v660 = vld [vmem:[%s3 + $0x148] sm:$0xff]
        %v661 = vld [vmem:[%s3 + $0x150] sm:$0xff]
        %v662 = vld [vmem:[%s3 + $0x158] sm:$0xff]
        %v663 = vld [vmem:[%s3 + $0x160] sm:$0xff]
        %v664 = vld [vmem:[%s3 + $0x168] sm:$0xff]
        %v665 = vld [vmem:[%s3 + $0x170] sm:$0xff]
        %v666 = vld [vmem:[%s3 + $0x178] sm:$0xff]
        %667 = vmatpush.msra.mxu0 %v634
        %668 = vmatpush.msra.mxu0 %v633
        %669 = vmatpush.msra.mxu0 %v632
        %670 = vmatpush.msra.mxu0 %v631
        %671 = vmatpush.msra.mxu0 %v630
        %672 = vmatpush.msra.mxu0 %v629
        %673 = vmatpush.msra.mxu0 %v628
        %674 = vmatpush.msra.mxu0 %v627
        %675 = vmatpush.msra.mxu0 %v626
        %676 = vmatpush.msra.mxu0 %v625
        %677 = vmatpush.msra.mxu0 %v624
        %678 = vmatpush.msra.mxu0 %v623
        %679 = vmatpush.msra.mxu0 %v622
        %680 = vmatpush.msra.mxu0 %v621
        %681 = vmatpush.msra.mxu0 %v620
        %682 = vmatpush.msra.mxu0 %v619
        %683 = vmatmul.f32.gmra.mxu0 %v607
        %v684 = vpop.f32.mrf.mxu0
        %v685 = vadd.f32 0.0, %v684
        %686 = vmatmul.f32.gmra.mxu0 %v610
        %v687 = vpop.f32.mrf.mxu0
        %v688 = vadd.f32 0.0, %v687
        %689 = vmatmul.f32.gmra.mxu0 %v613
        %v690 = vpop.f32.mrf.mxu0
        %v691 = vadd.f32 0.0, %v690
        %692 = vmatmul.f32.gmra.mxu0 %v616
        %v693 = vpop.f32.mrf.mxu0
        %v694 = vadd.f32 0.0, %v693
        %695 = vdwg.mxu0
        %696 = vmatpush.msra.mxu0 %v650
        %697 = vmatpush.msra.mxu0 %v649
        %698 = vmatpush.msra.mxu0 %v648
        %699 = vmatpush.msra.mxu0 %v647
        %700 = vmatpush.msra.mxu0 %v646
        %701 = vmatpush.msra.mxu0 %v645
        %702 = vmatpush.msra.mxu0 %v644
        %703 = vmatpush.msra.mxu0 %v643
        %704 = vmatpush.msra.mxu0 %v642
        %705 = vmatpush.msra.mxu0 %v641
        %706 = vmatpush.msra.mxu0 %v640
        %707 = vmatpush.msra.mxu0 %v639
        %708 = vmatpush.msra.mxu0 %v638
        %709 = vmatpush.msra.mxu0 %v637
        %710 = vmatpush.msra.mxu0 %v636
        %711 = vmatpush.msra.mxu0 %v635
        %712 = vmatmul.f32.gmra.mxu0 %v608
        %v713 = vpop.f32.mrf.mxu0
        %v714 = vadd.f32 %v685, %v713
        %715 = vmatmul.f32.gmra.mxu0 %v611
        %v716 = vpop.f32.mrf.mxu0
        %v717 = vadd.f32 %v688, %v716
        %718 = vmatmul.f32.gmra.mxu0 %v614
        %v719 = vpop.f32.mrf.mxu0
        %v720 = vadd.f32 %v691, %v719
        %721 = vmatmul.f32.gmra.mxu0 %v617
        %v722 = vpop.f32.mrf.mxu0
        %v723 = vadd.f32 %v694, %v722
        %724 = vdwg.mxu0
        %725 = vmatpush.msra.mxu0 %v666
        %726 = vmatpush.msra.mxu0 %v665
        %727 = vmatpush.msra.mxu0 %v664
        %728 = vmatpush.msra.mxu0 %v663
        %729 = vmatpush.msra.mxu0 %v662
        %730 = vmatpush.msra.mxu0 %v661
        %731 = vmatpush.msra.mxu0 %v660
        %732 = vmatpush.msra.mxu0 %v659
        %733 = vmatpush.msra.mxu0 %v658
        %734 = vmatpush.msra.mxu0 %v657
        %735 = vmatpush.msra.mxu0 %v656
        %736 = vmatpush.msra.mxu0 %v655
        %737 = vmatpush.msra.mxu0 %v654
        %738 = vmatpush.msra.mxu0 %v653
        %739 = vmatpush.msra.mxu0 %v652
        %740 = vmatpush.msra.mxu0 %v651
        %741 = vmatmul.f32.gmra.mxu0 %v609
        %v742 = vpop.f32.mrf.mxu0
        %v743 = vadd.f32 %v714, %v742
        %744 = vmatmul.f32.gmra.mxu0 %v612
        %v745 = vpop.f32.mrf.mxu0
        %v746 = vadd.f32 %v717, %v745
        %747 = vmatmul.f32.gmra.mxu0 %v615
        %v748 = vpop.f32.mrf.mxu0
        %v749 = vadd.f32 %v720, %v748
        %750 = vmatmul.f32.gmra.mxu0 %v618
        %v751 = vpop.f32.mrf.mxu0
        %v752 = vadd.f32 %v723, %v751
        %753 = vdwg.mxu0
        %v754 = vmul.f32 %v596, %v596
        %v755 = vmul.f32 %v599, %v599
        %v756 = vmul.f32 %v602, %v602
        %v757 = vmul.f32 %v605, %v605
        %v758 = vsub.f32 %v743, %v754
        %v759 = vsub.f32 %v746, %v755
        %v760 = vsub.f32 %v749, %v756
        %v761 = vsub.f32 %v752, %v757
        %v762 = vmax.f32 %v758, 0.0
        %v763 = vmax.f32 %v759, 0.0
        %v764 = vmax.f32 %v760, 0.0
        %v765 = vmax.f32 %v761, 0.0
        %v766 = vadd.f32 %v762, 1e-05
        %v767 = vadd.f32 %v763, 1e-05
        %v768 = vadd.f32 %v764, 1e-05
        %v769 = vadd.f32 %v765, 1e-05
        %v770 = vrsqrt.pop %v766
        %v771 = vmul.f32 %v770, %v766
        %v772 = vmul.f32 %v771, %v770
        %v773 = vmul.f32 0.5, %v772
        %v774 = vsub.f32 1.5, %v773
        %v775 = vmul.f32 %v770, %v774
        %vm776 = vweird.f32 %v766
        %vm777 = vweird.f32 %v770
        %vm778 = vmor %vm776, %vm777
        %v779 = vsel %vm778, %v770, %v775
        %v780 = vrsqrt.pop %v767
        %v781 = vmul.f32 %v780, %v767
        %v782 = vmul.f32 %v781, %v780
        %v783 = vmul.f32 0.5, %v782
        %v784 = vsub.f32 1.5, %v783
        %v785 = vmul.f32 %v780, %v784
        %vm786 = vweird.f32 %v767
        %vm787 = vweird.f32 %v780
        %vm788 = vmor %vm786, %vm787
        %v789 = vsel %vm788, %v780, %v785
        %v790 = vrsqrt.pop %v768
        %v791 = vmul.f32 %v790, %v768
        %v792 = vmul.f32 %v791, %v790
        %v793 = vmul.f32 0.5, %v792
        %v794 = vsub.f32 1.5, %v793
        %v795 = vmul.f32 %v790, %v794
        %vm796 = vweird.f32 %v768
        %vm797 = vweird.f32 %v790
        %vm798 = vmor %vm796, %vm797
        %v799 = vsel %vm798, %v790, %v795
        %v800 = vrsqrt.pop %v769
        %v801 = vmul.f32 %v800, %v769
        %v802 = vmul.f32 %v801, %v800
        %v803 = vmul.f32 0.5, %v802
        %v804 = vsub.f32 1.5, %v803
        %v805 = vmul.f32 %v800, %v804
        %vm806 = vweird.f32 %v769
        %vm807 = vweird.f32 %v800
        %vm808 = vmor %vm806, %vm807
        %v809 = vsel %vm808, %v800, %v805
        %v810 = vld [vmem:[%s4] sm:$0xff]
        %v811 = vld [vmem:[%s4 + $0x8] sm:$0xff]
        %v812 = vld [vmem:[%s4 + $0x10] sm:$0xff]
        %vm813 = vcmask 64512
        %v815 = vsel %vm813, %v596, 0
        %v818 = vsel %vm813, %v599, 0
        %v821 = vsel %vm813, %v602, 0
        %v824 = vsel %vm813, %v605, 0
        %826 = vmatpush.msra.mxu0 0.0
        %827 = vmatpush.msra.mxu0 0.0
        %828 = vmatpush.msra.mxu0 0.0
        %829 = vmatpush.msra.mxu0 0.0
        %830 = vmatpush.msra.mxu0 0.0
        %831 = vmatpush.msra.mxu0 0.0
        %832 = vmatpush.msra.mxu0 0.0
        %833 = vmatpush.msra.mxu0 0.0
        %834 = vmatpush.msra.mxu0 0.0
        %835 = vmatpush.msra.mxu0 0.0
        %836 = vmatpush.msra.mxu0 0.0
        %837 = vmatpush.msra.mxu0 0.0
        %838 = vmatpush.msra.mxu0 0.0
        %839 = vmatpush.msra.mxu0 0.0
        %840 = vmatpush.msra.mxu0 0.0
        %841 = vmatpush.msra.mxu0 %v810
        %842 = vmatmul.f32.gmra.mxu0 %v815
        %v843 = vpop.f32.mrf.mxu0
        %v844 = vadd.f32 0.0, %v843
        %845 = vmatmul.f32.gmra.mxu0 %v818
        %v846 = vpop.f32.mrf.mxu0
        %v847 = vadd.f32 0.0, %v846
        %848 = vmatmul.f32.gmra.mxu0 %v821
        %v849 = vpop.f32.mrf.mxu0
        %v850 = vadd.f32 0.0, %v849
        %851 = vmatmul.f32.gmra.mxu0 %v824
        %v852 = vpop.f32.mrf.mxu0
        %v853 = vadd.f32 0.0, %v852
        %854 = vdwg.mxu0
        %855 = vmatpush.msra.mxu0 0.0
        %856 = vmatpush.msra.mxu0 0.0
        %857 = vmatpush.msra.mxu0 0.0
        %858 = vmatpush.msra.mxu0 0.0
        %859 = vmatpush.msra.mxu0 0.0
        %860 = vmatpush.msra.mxu0 0.0
        %861 = vmatpush.msra.mxu0 0.0
        %862 = vmatpush.msra.mxu0 0.0
        %863 = vmatpush.msra.mxu0 0.0
        %864 = vmatpush.msra.mxu0 0.0
        %865 = vmatpush.msra.mxu0 0.0
        %866 = vmatpush.msra.mxu0 0.0
        %867 = vmatpush.msra.mxu0 0.0
        %868 = vmatpush.msra.mxu0 0.0
        %869 = vmatpush.msra.mxu0 0.0
        %870 = vmatpush.msra.mxu0 %v811
        %871 = vmatmul.f32.gmra.mxu0 %v815
        %v872 = vpop.f32.mrf.mxu0
        %v873 = vadd.f32 0.0, %v872
        %874 = vmatmul.f32.gmra.mxu0 %v818
        %v875 = vpop.f32.mrf.mxu0
        %v876 = vadd.f32 0.0, %v875
        %877 = vmatmul.f32.gmra.mxu0 %v821
        %v878 = vpop.f32.mrf.mxu0
        %v879 = vadd.f32 0.0, %v878
        %880 = vmatmul.f32.gmra.mxu0 %v824
        %v881 = vpop.f32.mrf.mxu0
        %v882 = vadd.f32 0.0, %v881
        %883 = vdwg.mxu0
        %884 = vmatpush.msra.mxu0 0.0
        %885 = vmatpush.msra.mxu0 0.0
        %886 = vmatpush.msra.mxu0 0.0
        %887 = vmatpush.msra.mxu0 0.0
        %888 = vmatpush.msra.mxu0 0.0
        %889 = vmatpush.msra.mxu0 0.0
        %890 = vmatpush.msra.mxu0 0.0
        %891 = vmatpush.msra.mxu0 0.0
        %892 = vmatpush.msra.mxu0 0.0
        %893 = vmatpush.msra.mxu0 0.0
        %894 = vmatpush.msra.mxu0 0.0
        %895 = vmatpush.msra.mxu0 0.0
        %896 = vmatpush.msra.mxu0 0.0
        %897 = vmatpush.msra.mxu0 0.0
        %898 = vmatpush.msra.mxu0 0.0
        %899 = vmatpush.msra.mxu0 %v812
        %900 = vmatmul.f32.gmra.mxu0 %v815
        %v901 = vpop.f32.mrf.mxu0
        %v902 = vadd.f32 0.0, %v901
        %903 = vmatmul.f32.gmra.mxu0 %v818
        %v904 = vpop.f32.mrf.mxu0
        %v905 = vadd.f32 0.0, %v904
        %906 = vmatmul.f32.gmra.mxu0 %v821
        %v907 = vpop.f32.mrf.mxu0
        %v908 = vadd.f32 0.0, %v907
        %909 = vmatmul.f32.gmra.mxu0 %v824
        %v910 = vpop.f32.mrf.mxu0
        %v911 = vadd.f32 0.0, %v910
        %912 = vdwg.mxu0
        %v914 = vsel %vm813, %v779, 0
        %v917 = vsel %vm813, %v789, 0
        %v920 = vsel %vm813, %v799, 0
        %v923 = vsel %vm813, %v809, 0
        %925 = vmatpush.msra.mxu0 0.0
        %926 = vmatpush.msra.mxu0 0.0
        %927 = vmatpush.msra.mxu0 0.0
        %928 = vmatpush.msra.mxu0 0.0
        %929 = vmatpush.msra.mxu0 0.0
        %930 = vmatpush.msra.mxu0 0.0
        %931 = vmatpush.msra.mxu0 0.0
        %932 = vmatpush.msra.mxu0 0.0
        %933 = vmatpush.msra.mxu0 0.0
        %934 = vmatpush.msra.mxu0 0.0
        %935 = vmatpush.msra.mxu0 0.0
        %936 = vmatpush.msra.mxu0 0.0
        %937 = vmatpush.msra.mxu0 0.0
        %938 = vmatpush.msra.mxu0 0.0
        %939 = vmatpush.msra.mxu0 0.0
        %940 = vmatpush.msra.mxu0 %v810
        %941 = vmatmul.f32.gmra.mxu0 %v914
        %v942 = vpop.f32.mrf.mxu0
        %v943 = vadd.f32 0.0, %v942
        %944 = vmatmul.f32.gmra.mxu0 %v917
        %v945 = vpop.f32.mrf.mxu0
        %v946 = vadd.f32 0.0, %v945
        %947 = vmatmul.f32.gmra.mxu0 %v920
        %v948 = vpop.f32.mrf.mxu0
        %v949 = vadd.f32 0.0, %v948
        %950 = vmatmul.f32.gmra.mxu0 %v923
        %v951 = vpop.f32.mrf.mxu0
        %v952 = vadd.f32 0.0, %v951
        %953 = vdwg.mxu0
        %954 = vmatpush.msra.mxu0 0.0
        %955 = vmatpush.msra.mxu0 0.0
        %956 = vmatpush.msra.mxu0 0.0
        %957 = vmatpush.msra.mxu0 0.0
        %958 = vmatpush.msra.mxu0 0.0
        %959 = vmatpush.msra.mxu0 0.0
        %960 = vmatpush.msra.mxu0 0.0
        %961 = vmatpush.msra.mxu0 0.0
        %962 = vmatpush.msra.mxu0 0.0
        %963 = vmatpush.msra.mxu0 0.0
        %964 = vmatpush.msra.mxu0 0.0
        %965 = vmatpush.msra.mxu0 0.0
        %966 = vmatpush.msra.mxu0 0.0
        %967 = vmatpush.msra.mxu0 0.0
        %968 = vmatpush.msra.mxu0 0.0
        %969 = vmatpush.msra.mxu0 %v811
        %970 = vmatmul.f32.gmra.mxu0 %v914
        %v971 = vpop.f32.mrf.mxu0
        %v972 = vadd.f32 0.0, %v971
        %973 = vmatmul.f32.gmra.mxu0 %v917
        %v974 = vpop.f32.mrf.mxu0
        %v975 = vadd.f32 0.0, %v974
        %976 = vmatmul.f32.gmra.mxu0 %v920
        %v977 = vpop.f32.mrf.mxu0
        %v978 = vadd.f32 0.0, %v977
        %979 = vmatmul.f32.gmra.mxu0 %v923
        %v980 = vpop.f32.mrf.mxu0
        %v981 = vadd.f32 0.0, %v980
        %982 = vdwg.mxu0
        %983 = vmatpush.msra.mxu0 0.0
        %984 = vmatpush.msra.mxu0 0.0
        %985 = vmatpush.msra.mxu0 0.0
        %986 = vmatpush.msra.mxu0 0.0
        %987 = vmatpush.msra.mxu0 0.0
        %988 = vmatpush.msra.mxu0 0.0
        %989 = vmatpush.msra.mxu0 0.0
        %990 = vmatpush.msra.mxu0 0.0
        %991 = vmatpush.msra.mxu0 0.0
        %992 = vmatpush.msra.mxu0 0.0
        %993 = vmatpush.msra.mxu0 0.0
        %994 = vmatpush.msra.mxu0 0.0
        %995 = vmatpush.msra.mxu0 0.0
        %996 = vmatpush.msra.mxu0 0.0
        %997 = vmatpush.msra.mxu0 0.0
        %998 = vmatpush.msra.mxu0 %v812
        %999 = vmatmul.f32.gmra.mxu0 %v914
        %v1000 = vpop.f32.mrf.mxu0
        %v1001 = vadd.f32 0.0, %v1000
        %1002 = vmatmul.f32.gmra.mxu0 %v917
        %v1003 = vpop.f32.mrf.mxu0
        %v1004 = vadd.f32 0.0, %v1003
        %1005 = vmatmul.f32.gmra.mxu0 %v920
        %v1006 = vpop.f32.mrf.mxu0
        %v1007 = vadd.f32 0.0, %v1006
        %1008 = vmatmul.f32.gmra.mxu0 %v923
        %v1009 = vpop.f32.mrf.mxu0
        %v1010 = vadd.f32 0.0, %v1009
        %1011 = vdwg.mxu0
        %v1012 = vsub.f32 %v422, %v844
        %v1013 = vsub.f32 %v480, %v873
        %v1014 = vsub.f32 %v538, %v902
        %v1015 = vsub.f32 %v425, %v847
        %v1016 = vsub.f32 %v483, %v876
        %v1017 = vsub.f32 %v541, %v905
        %v1018 = vsub.f32 %v428, %v850
        %v1019 = vsub.f32 %v486, %v879
        %v1020 = vsub.f32 %v544, %v908
        %v1021 = vsub.f32 %v431, %v853
        %v1022 = vsub.f32 %v489, %v882
        %v1023 = vsub.f32 %v547, %v911
        %v1024 = vmul.f32 %v1012, %v943
        %v1025 = vmul.f32 %v1013, %v972
        %v1026 = vmul.f32 %v1014, %v1001
        %v1027 = vmul.f32 %v1015, %v946
        %v1028 = vmul.f32 %v1016, %v975
        %v1029 = vmul.f32 %v1017, %v1004
        %v1030 = vmul.f32 %v1018, %v949
        %v1031 = vmul.f32 %v1019, %v978
        %v1032 = vmul.f32 %v1020, %v1007
        %v1033 = vmul.f32 %v1021, %v952
        %v1034 = vmul.f32 %v1022, %v981
        %v1035 = vmul.f32 %v1023, %v1010
        %s1036 = scalar_lea.vmem %s2, 1
        %v1037 = vld [vmem:[%s1036] ss:$4 sm:$0x7]
        %v1039 = vperm.slane %v1037, 0
        %v1040 = vperm.slane %v1037, 1
        %v1041 = vperm.slane %v1037, 2
        %v1045 = vmul.f32 %v1024, %v1039
        %v1046 = vmul.f32 %v1025, %v1040
        %v1047 = vmul.f32 %v1026, %v1041
        %v1048 = vmul.f32 %v1027, %v1039
        %v1049 = vmul.f32 %v1028, %v1040
        %v1050 = vmul.f32 %v1029, %v1041
        %v1051 = vmul.f32 %v1030, %v1039
        %v1052 = vmul.f32 %v1031, %v1040
        %v1053 = vmul.f32 %v1032, %v1041
        %v1054 = vmul.f32 %v1033, %v1039
        %v1055 = vmul.f32 %v1034, %v1040
        %v1056 = vmul.f32 %v1035, %v1041
        %s1057 = scalar_lea.vmem %s2, 2
        %v1058 = vld [vmem:[%s1057] ss:$4 sm:$0x7]
        %v1060 = vperm.slane %v1058, 0
        %v1061 = vperm.slane %v1058, 1
        %v1062 = vperm.slane %v1058, 2
        %v1066 = vadd.f32 %v1045, %v1060
        %v1067 = vadd.f32 %v1046, %v1061
        %v1068 = vadd.f32 %v1047, %v1062
        %v1069 = vadd.f32 %v1048, %v1060
        %v1070 = vadd.f32 %v1049, %v1061
        %v1071 = vadd.f32 %v1050, %v1062
        %v1072 = vadd.f32 %v1051, %v1060
        %v1073 = vadd.f32 %v1052, %v1061
        %v1074 = vadd.f32 %v1053, %v1062
        %v1075 = vadd.f32 %v1054, %v1060
        %v1076 = vadd.f32 %v1055, %v1061
        %v1077 = vadd.f32 %v1056, %v1062
        %1078 = vst [vmem:[%s220] sm:$0xff] %v1066
        %1079 = vst [vmem:[%s220 + $0x8] sm:$0xff] %v1067
        %1080 = vst [vmem:[%s220 + $0x10] sm:$0xff] %v1068
        %1081 = vst [vmem:[%s220 + $0x18] sm:$0xff] %v1069
        %1082 = vst [vmem:[%s220 + $0x20] sm:$0xff] %v1070
        %1083 = vst [vmem:[%s220 + $0x28] sm:$0xff] %v1071
        %1084 = vst [vmem:[%s220 + $0x30] sm:$0xff] %v1072
        %1085 = vst [vmem:[%s220 + $0x38] sm:$0xff] %v1073
        %1086 = vst [vmem:[%s220 + $0x40] sm:$0xff] %v1074
        %1087 = vst [vmem:[%s220 + $0x48] sm:$0xff] %v1075
        %1088 = vst [vmem:[%s220 + $0x50] sm:$0xff] %v1076
        %1089 = vst [vmem:[%s220 + $0x58] sm:$0xff] %v1077
        %s1090 = sand.u32 %s137, 1
        %s1091 = scalar_lea.sflag [#allocation3], %s1090
        %s1092 = sand.u32 %s137, 1
        %s1093 = smul.addr %s1092, 96
        %s1094 = scalar_lea.vmem [#allocation2], %s1093
        // Predicated region
        $region41: #{tpu_custom_call.1} parent=39 // pred_check
          %p1095 = pneg %p147
        $region42: #{tpu_custom_call.1} parent=39 // pred_check_branch
          %1097 = sbr.rel (%p1095) target = $region44
        $region43: #{tpu_custom_call.1} parent=39 // pred_region
          %s1098 = smul.u32 4, %s19
          %1100 = vsyncadd %s1091, 0
          %s1101 = smul.addr %s1098, 3
          %s1102 = smul.addr %s1101, 8
          %s1103 = scalar_lea.hbm %s5, %s1102
          %s1104 = sshll.u32 %s1094, 4
          %s1105 = int_to_ptr.vmem [resolvable:$true] %s1104
          %s1106 = sshll.u32 %s1103, 4
          %s1107 = int_to_ptr.hbm [resolvable:$true] %s1106
          %1112 = dma.vmem_to_hbm [thread:$0]  %s1105, 1536, %s1107, %s1091, 384, 384, 24
        $region44: #{tpu_custom_call.1} parent=39 // pred_fallthru
          _
      $region40: #{tpu_custom_call.1} parent=5 // pred_fallthru
        _
      %p1113 = scmp.le.s32.totalorder 2, %s14
      // Predicated region
      $region45: #{tpu_custom_call.1} parent=5 // pred_check
        %p1114 = pneg %p1113
      $region46: #{tpu_custom_call.1} parent=5 // pred_check_branch
        %1116 = sbr.rel (%p1114) target = $region48
      $region47: #{tpu_custom_call.1} parent=5 // pred_region
        %s1117 = ssub.s32 %s14, 2
        // Predicated region
        $region49: #{tpu_custom_call.1} parent=47 // pred_check
          %p1118 = pneg %p153
        $region50: #{tpu_custom_call.1} parent=47 // pred_check_branch
          %1120 = sbr.rel (%p1118) target = $region52
        $region51: #{tpu_custom_call.1} parent=47 // pred_region
          %s1121 = sand.u32 %s138, 1
          %s1122 = scalar_lea.sflag [#allocation3], %s1121
          %s1123 = sand.u32 %s138, 1
          %s1124 = smul.addr %s1123, 96
          %s1125 = scalar_lea.vmem [#allocation2], %s1124
          %1127 = dma.done %s1122, 1536
        $region52: #{tpu_custom_call.1} parent=47 // pred_fallthru
          _
      $region48: #{tpu_custom_call.1} parent=5 // pred_fallthru
        _
    $region6: #{tpu_custom_call.1} parent=1 // loop_footer
      %s18 = sadd.s32 1, %s14
    $region7: #{tpu_custom_call.1} parent=1 // loop_footer_branch
      %13 = sbr.rel target = $region3
    $region8: #{tpu_custom_call.1} parent=1 // loop_exit
      _
    %1128 = vsyncpa [#allocation3], 1
    %s1129 = scalar_lea.sflag [#allocation3], 1
    %1130 = vsyncpa %s1129, 1

</llo_original>
